<compile_context>
chip_gen: v7x
topology: tpu7x:2x2x1
jax: 0.10.0
libtpu: 0.0.40
codegen_flags: <defaults>
</compile_context>

<pallas_src>
import jax
import jax.numpy as jnp
from jax.experimental import pallas as pl
from jax.experimental.pallas import tpu as pltpu

IN_HSZ = 32
OUT_HSZ = 64
LN_EPS = 1e-5  # PyTorch nn.LayerNorm default


def linear_layer_kernel(x_ref, w_ref, b_ref, gamma_ref, beta_ref, out_ref):
    # Single invocation: x_ref holds all B*L rows, (M, D_in).
    x = x_ref[...].astype(jnp.float32)

    # LayerNorm over the feature axis (f32 VPU math).
    mu = jnp.mean(x, axis=-1, keepdims=True)
    var = jnp.mean((x - mu) ** 2, axis=-1, keepdims=True)
    x_hat = (x - mu) * jax.lax.rsqrt(var + LN_EPS)
    x_ln = x_hat * gamma_ref[...] + beta_ref[...]      # (M, D_in)

    # TODO(synk): nn.Dropout(0.1) is an inference no-op; training-mode dropout
    # masking is not implemented.

    # Linear: one MXU matmul over all rows at once, f32 accumulation.
    y = jnp.dot(x_ln, w_ref[...], preferred_element_type=jnp.float32) + b_ref[...]

    # ReLU.
    out_ref[...] = jnp.maximum(y, 0.0).astype(out_ref.dtype)


@jax.jit
def linear_layer(x, params):
    """x: (N, L, D_in) f32 -> (N, L, D_out) f32."""
    N, L, D_in = x.shape
    D_out = params["w"].shape[1]
    M = N * L
    x2d = x.reshape(M, D_in)   # flatten batch*seq so the matmul is one MXU push

    out2d = pl.pallas_call(
        linear_layer_kernel,
        out_shape=jax.ShapeDtypeStruct((M, D_out), x.dtype),
        grid=(1,),
        in_specs=[
            pl.BlockSpec((M, D_in), lambda i: (0, 0)),      # x  (all rows)
            pl.BlockSpec((D_in, D_out), lambda i: (0, 0)),  # W  (pre-transposed)
            pl.BlockSpec((1, D_out), lambda i: (0, 0)),     # b
            pl.BlockSpec((1, D_in), lambda i: (0, 0)),      # gamma
            pl.BlockSpec((1, D_in), lambda i: (0, 0)),      # beta
        ],
        out_specs=pl.BlockSpec((M, D_out), lambda i: (0, 0)),
        compiler_params=pltpu.CompilerParams(
            dimension_semantics=("arbitrary",)),
    )(x2d, params["w"], params["b"], params["gamma"], params["beta"])

    return out2d.reshape(N, L, D_out)


def ref_linear_layer(x, params):
    """Pure-JAX reference mirroring the PyTorch forward (eval mode)."""
    mu = jnp.mean(x, axis=-1, keepdims=True)
    var = jnp.mean((x - mu) ** 2, axis=-1, keepdims=True)
    x_ln = (x - mu) / jnp.sqrt(var + LN_EPS) * params["gamma"][0] + params["beta"][0]
    y = x_ln @ params["w"] + params["b"][0]
    return jnp.maximum(y, 0.0)


def init_params(key, d_in, d_out):
    k_w, k_b, k_g, k_be = jax.random.split(key, 4)
    std = 0.02
    return {
        # nn.Linear weight is (out, in) in torch; stored here pre-transposed
        # to (in, out) so the kernel does x @ W directly.
        "w": jax.random.normal(k_w, (d_in, d_out), jnp.float32) * std,
        "b": jax.random.normal(k_b, (1, d_out), jnp.float32) * std,
        "gamma": 1.0 + jax.random.normal(k_g, (1, d_in), jnp.float32) * std,
        "beta": jax.random.normal(k_be, (1, d_in), jnp.float32) * std,
    }


if __name__ == "__main__":
    N, L, D_in, D_out = 2, 8, IN_HSZ, OUT_HSZ
    key = jax.random.PRNGKey(0)
    k_x, k_p = jax.random.split(key)

    x = jax.random.normal(k_x, (N, L, D_in), jnp.float32)
    params = init_params(k_p, D_in, D_out)

    out = linear_layer(x, params)
    out = jax.block_until_ready(out)

    ref = ref_linear_layer(x, params)
    assert out.shape == (N, L, D_out)
    assert jnp.allclose(out, ref, atol=1e-4, rtol=1e-4)

    print("KERNEL_OK")
</pallas_src>

<mosaic_0001>
module attributes {stable_mosaic.version = 11 : i64} {
  func.func @linear_layer_kernel(%arg0: i32, %arg1: memref<16x32xf32, #tpu.memory_space<vmem>>, %arg2: memref<32x64xf32, #tpu.memory_space<vmem>>, %arg3: memref<1x64xf32, #tpu.memory_space<vmem>>, %arg4: memref<1x32xf32, #tpu.memory_space<vmem>>, %arg5: memref<1x32xf32, #tpu.memory_space<vmem>>, %arg6: memref<16x64xf32, #tpu.memory_space<vmem>>) attributes {dimension_semantics = [#tpu.dimension_semantics<arbitrary>], iteration_bounds = array<i64: 1>, scalar_prefetch = 0 : i64, scratch_operands = 0 : i64, tpu.core_type = #tpu.core_type<tc>, window_params = [{pipeline_mode = #tpu.pipeline_mode<synchronous>, transform_indices = @transform_0, window_bounds = array<i64: 16, 32>}, {pipeline_mode = #tpu.pipeline_mode<synchronous>, transform_indices = @transform_1, window_bounds = array<i64: 32, 64>}, {pipeline_mode = #tpu.pipeline_mode<synchronous>, transform_indices = @transform_2, window_bounds = array<i64: 1, 64>}, {pipeline_mode = #tpu.pipeline_mode<synchronous>, transform_indices = @transform_3, window_bounds = array<i64: 1, 32>}, {pipeline_mode = #tpu.pipeline_mode<synchronous>, transform_indices = @transform_4, window_bounds = array<i64: 1, 32>}, {pipeline_mode = #tpu.pipeline_mode<synchronous>, transform_indices = @transform_5, window_bounds = array<i64: 16, 64>}]} {
    %c0 = arith.constant 0 : index
    %c0_0 = arith.constant 0 : index
    %0 = vector.load %arg1[%c0, %c0_0] : memref<16x32xf32, #tpu.memory_space<vmem>>, vector<16x32xf32>
    %cst = arith.constant dense<0.000000e+00> : vector<16xf32>
    %1 = vector.multi_reduction <add>, %0, %cst [1] : vector<16x32xf32> to vector<16xf32>
    %2 = vector.shape_cast %1 : vector<16xf32> to vector<16x1xf32>
    %cst_1 = arith.constant 3.200000e+01 : f32
    %3 = vector.broadcast %cst_1 : f32 to vector<16x1xf32>
    %4 = arith.divf %2, %3 : vector<16x1xf32>
    %5 = vector.broadcast %4 : vector<16x1xf32> to vector<16x32xf32>
    %6 = arith.subf %0, %5 : vector<16x32xf32>
    %7 = arith.mulf %6, %6 : vector<16x32xf32>
    %cst_2 = arith.constant dense<0.000000e+00> : vector<16xf32>
    %8 = vector.multi_reduction <add>, %7, %cst_2 [1] : vector<16x32xf32> to vector<16xf32>
    %9 = vector.shape_cast %8 : vector<16xf32> to vector<16x1xf32>
    %cst_3 = arith.constant 3.200000e+01 : f32
    %10 = vector.broadcast %cst_3 : f32 to vector<16x1xf32>
    %11 = arith.divf %9, %10 : vector<16x1xf32>
    %12 = vector.broadcast %4 : vector<16x1xf32> to vector<16x32xf32>
    %13 = arith.subf %0, %12 : vector<16x32xf32>
    %cst_4 = arith.constant 9.99999974E-6 : f32
    %14 = vector.broadcast %cst_4 : f32 to vector<16x1xf32>
    %15 = arith.addf %11, %14 : vector<16x1xf32>
    %16 = math.rsqrt %15 : vector<16x1xf32>
    %17 = vector.broadcast %16 : vector<16x1xf32> to vector<16x32xf32>
    %18 = arith.mulf %13, %17 : vector<16x32xf32>
    %c0_5 = arith.constant 0 : index
    %c0_6 = arith.constant 0 : index
    %19 = vector.load %arg4[%c0_5, %c0_6] : memref<1x32xf32, #tpu.memory_space<vmem>>, vector<1x32xf32>
    %20 = vector.broadcast %19 : vector<1x32xf32> to vector<16x32xf32>
    %21 = arith.mulf %18, %20 : vector<16x32xf32>
    %c0_7 = arith.constant 0 : index
    %c0_8 = arith.constant 0 : index
    %22 = vector.load %arg5[%c0_7, %c0_8] : memref<1x32xf32, #tpu.memory_space<vmem>>, vector<1x32xf32>
    %23 = vector.broadcast %22 : vector<1x32xf32> to vector<16x32xf32>
    %24 = arith.addf %21, %23 : vector<16x32xf32>
    %c0_9 = arith.constant 0 : index
    %c0_10 = arith.constant 0 : index
    %25 = vector.load %arg2[%c0_9, %c0_10] : memref<32x64xf32, #tpu.memory_space<vmem>>, vector<32x64xf32>
    %cst_11 = arith.constant dense<0.000000e+00> : vector<16x64xf32>
    %26 = tpu.matmul %24, %25, %cst_11 {dimension_numbers = #tpu.dot_dimension_numbers<[1], [0], [0], [1], [0, 0, 1, 1], [], []>} : vector<16x32xf32>, vector<32x64xf32>, vector<16x64xf32> -> vector<16x64xf32>
    %c0_12 = arith.constant 0 : index
    %c0_13 = arith.constant 0 : index
    %27 = vector.load %arg3[%c0_12, %c0_13] : memref<1x64xf32, #tpu.memory_space<vmem>>, vector<1x64xf32>
    %28 = vector.broadcast %27 : vector<1x64xf32> to vector<16x64xf32>
    %29 = arith.addf %26, %28 : vector<16x64xf32>
    %cst_14 = arith.constant 0.000000e+00 : f32
    %30 = vector.broadcast %cst_14 : f32 to vector<16x64xf32>
    %31 = arith.maximumf %29, %30 : vector<16x64xf32>
    %c0_15 = arith.constant 0 : index
    %c0_16 = arith.constant 0 : index
    %32 = vector.load %arg6[%c0_15, %c0_16] : memref<16x64xf32, #tpu.memory_space<vmem>>, vector<16x64xf32>
    tpu.vector_store %arg6[%c0_15, %c0_16], %31 {strides = array<i32>} : memref<16x64xf32, #tpu.memory_space<vmem>>, vector<16x64xf32>,
    return
  }
  func.func @transform_0(%arg0: i32) -> (i32, i32) {
    %c0_i32 = arith.constant 0 : i32
    %c0_i32_0 = arith.constant 0 : i32
    %c0_i32_1 = arith.constant 0 : i32
    return %c0_i32, %c0_i32_0 : i32, i32
  }
  func.func @transform_1(%arg0: i32) -> (i32, i32) {
    %c0_i32 = arith.constant 0 : i32
    %c0_i32_0 = arith.constant 0 : i32
    %c0_i32_1 = arith.constant 0 : i32
    return %c0_i32, %c0_i32_0 : i32, i32
  }
  func.func @transform_2(%arg0: i32) -> (i32, i32) {
    %c0_i32 = arith.constant 0 : i32
    %c0_i32_0 = arith.constant 0 : i32
    %c0_i32_1 = arith.constant 0 : i32
    return %c0_i32, %c0_i32_0 : i32, i32
  }
  func.func @transform_3(%arg0: i32) -> (i32, i32) {
    %c0_i32 = arith.constant 0 : i32
    %c0_i32_0 = arith.constant 0 : i32
    %c0_i32_1 = arith.constant 0 : i32
    return %c0_i32, %c0_i32_0 : i32, i32
  }
  func.func @transform_4(%arg0: i32) -> (i32, i32) {
    %c0_i32 = arith.constant 0 : i32
    %c0_i32_0 = arith.constant 0 : i32
    %c0_i32_1 = arith.constant 0 : i32
    return %c0_i32, %c0_i32_0 : i32, i32
  }
  func.func @transform_5(%arg0: i32) -> (i32, i32) {
    %c0_i32 = arith.constant 0 : i32
    %c0_i32_0 = arith.constant 0 : i32
    %c0_i32_1 = arith.constant 0 : i32
    return %c0_i32, %c0_i32_0 : i32, i32
  }
}

</mosaic_0001>

<llo_original>
// kernel: linear_layer.1
$region0: #{linear_layer.1}
  #allocation0 [shape = 'u32[]', space=smem, size = 0x4, offset = 0x4, fixed_abs, tag = 'smem constant byte address 0x4 - core index']
  #allocation1 [shape = 'u32[144,128]{1,0:T(1,128)}', space=vmem, size = 0x12000, scoped, tag = 'internal scratch']
  %s0 = inlined_call_operand.hbm [shape: f32[16,32], index: 0, kind: input, shape index: {}]
  %s1 = inlined_call_operand.hbm [shape: f32[32,64], index: 1, kind: input, shape index: {}]
  %s2 = inlined_call_operand.vmem [shape: f32[1,64], index: 2, kind: input, shape index: {}]
  %s3 = inlined_call_operand.vmem [shape: f32[1,32], index: 3, kind: input, shape index: {}]
  %s4 = inlined_call_operand.vmem [shape: f32[1,32], index: 4, kind: input, shape index: {}]
  %s5 = inlined_call_operand.hbm [shape: f32[16,64], index: 5, kind: output, shape index: {}]
  %s6 = sld [smem:[#allocation0]]
  $region38: #{linear_layer.1} parent=0
    _
  %s8 = ssub.s32 1, %s6
  %s9 = scalar_select 0, %s8, %s6
  $region1: #{linear_layer.1} parent=0
    #allocation2 [shape = 'u8[8192]{0}', space=vmem, size = 0x2000, scoped, tag = 'input window, operand 0, single buffered']
    #allocation3 [shape = 's32[1]{0}', space=sflag, size = 0x4, scoped, tag = 'scoped memory for linear_layer.1']
    #allocation4 [shape = 's32[1]{0}', space=sflag, size = 0x4, scoped, tag = 'scoped memory for linear_layer.1']
    #allocation5 [shape = 'u8[16384]{0}', space=vmem, size = 0x4000, scoped, tag = 'input window, operand 1, single buffered']
    #allocation6 [shape = 's32[1]{0}', space=sflag, size = 0x4, scoped, tag = 'scoped memory for linear_layer.1']
    #allocation7 [shape = 'u8[8192]{0}', space=vmem, size = 0x2000, scoped, tag = 'output window, operand 0, single buffered']
    %10 = vsyncpa [#allocation3], 0
    %11 = vsyncpa [#allocation6], 0
    %12 = vsyncpa [#allocation4], 0
    // Predicated region
    $region2: #{linear_layer.1} parent=1 // pred_check
      _
    $region3: #{linear_layer.1} parent=1 // pred_check_branch
      %14 = sbr.rel (0) target = $region5
    $region4: #{linear_layer.1} parent=1 // pred_region
      %s16 = ssub.s32 256, 256
      %17 = vsyncadd [#allocation3], %s16
      %s18 = sshll.u32 [#allocation2], 4
      %s19 = int_to_ptr.vmem [resolvable:$true] %s18
      %24 = dma.hbm_to_vmem [thread:$0]  %s0, 256, %s19, [#allocation3], 128, 128, 8
    $region5: #{linear_layer.1} parent=1 // pred_fallthru
      _
    // Predicated region
    $region6: #{linear_layer.1} parent=1 // pred_check
      _
    $region7: #{linear_layer.1} parent=1 // pred_check_branch
      %26 = sbr.rel (0) target = $region9
    $region8: #{linear_layer.1} parent=1 // pred_region
      %s28 = ssub.s32 512, 512
      %29 = vsyncadd [#allocation6], %s28
      %s30 = sshll.u32 [#allocation5], 4
      %s31 = int_to_ptr.vmem [resolvable:$true] %s30
      %36 = dma.hbm_to_vmem [thread:$0]  %s1, 512, %s31, [#allocation6], 128, 128, 8
    $region9: #{linear_layer.1} parent=1 // pred_fallthru
      _
    // Predicated region
    $region10: #{linear_layer.1} parent=1 // pred_check
      _
    $region11: #{linear_layer.1} parent=1 // pred_check_branch
      %38 = sbr.rel (0) target = $region13
    $region12: #{linear_layer.1} parent=1 // pred_region
      _
    $region13: #{linear_layer.1} parent=1 // pred_fallthru
      _
    // Predicated region
    $region14: #{linear_layer.1} parent=1 // pred_check
      _
    $region15: #{linear_layer.1} parent=1 // pred_check_branch
      %40 = sbr.rel (0) target = $region17
    $region16: #{linear_layer.1} parent=1 // pred_region
      _
    $region17: #{linear_layer.1} parent=1 // pred_fallthru
      _
    // Predicated region
    $region18: #{linear_layer.1} parent=1 // pred_check
      _
    $region19: #{linear_layer.1} parent=1 // pred_check_branch
      %42 = sbr.rel (0) target = $region21
    $region20: #{linear_layer.1} parent=1 // pred_region
      _
    $region21: #{linear_layer.1} parent=1 // pred_fallthru
      _
    // Predicated region
    $region22: #{linear_layer.1} parent=1 // pred_check
      _
    $region23: #{linear_layer.1} parent=1 // pred_check_branch
      %44 = sbr.rel (0) target = $region25
    $region24: #{linear_layer.1} parent=1 // pred_region
      %45 = dma.done [#allocation3], 256
    $region25: #{linear_layer.1} parent=1 // pred_fallthru
      _
    // Predicated region
    $region26: #{linear_layer.1} parent=1 // pred_check
      _
    $region27: #{linear_layer.1} parent=1 // pred_check_branch
      %47 = sbr.rel (0) target = $region29
    $region28: #{linear_layer.1} parent=1 // pred_region
      %48 = dma.done [#allocation6], 512
    $region29: #{linear_layer.1} parent=1 // pred_fallthru
      _
    %v49 = vld [vmem:[#allocation2] sm:$0xff]
    %v50 = vld [vmem:[#allocation2 + $0x8] sm:$0xff]
    %vm51 = vcmask 261120
    %v52 = vsel %vm51, %v49, 0.0
    %53 = vadd.xlane.f32.xlu0 %v52
    %v54 = vpop.xlane.xlu0 %53
    %v55 = vsel %vm51, %v50, 0.0
    %56 = vadd.xlane.f32.xlu0 %v55
    %v57 = vpop.xlane.xlu0 %56
    %v58 = vrcp.pop 32.0
    %v59 = vmul.f32 %v54, %v58
    %v60 = vmul.f32 %v57, %v58
    %v61 = vsub.f32 %v49, %v59
    %v62 = vsub.f32 %v50, %v60
    %v63 = vmul.f32 %v61, %v61
    %v64 = vmul.f32 %v62, %v62
    %v65 = vsel %vm51, %v63, 0.0
    %66 = vadd.xlane.f32.xlu0 %v65
    %v67 = vpop.xlane.xlu0 %66
    %v68 = vsel %vm51, %v64, 0.0
    %69 = vadd.xlane.f32.xlu0 %v68
    %v70 = vpop.xlane.xlu0 %69
    %v71 = vmul.f32 %v67, %v58
    %v72 = vmul.f32 %v70, %v58
    %v73 = vadd.f32 %v71, 1e-05
    %v74 = vadd.f32 %v72, 1e-05
    %v75 = vrsqrt.pop %v73
    %v76 = vrsqrt.pop %v74
    %v77 = vmul.f32 %v61, %v75
    %v78 = vmul.f32 %v62, %v76
    %v79 = vld [vmem:[%s3] sm:$0x1]
    %v81 = vlaneseq
    %v82 = vshrl.u32 %v81, 7
    %v83 = vsub.s32 0, %v82
    %v84 = vrot.slane %v79, %v83
    %v86 = vmul.f32 %v77, %v84
    %v87 = vmul.f32 %v78, %v84
    %v88 = vld [vmem:[%s4] sm:$0x1]
    %v90 = vlaneseq
    %v91 = vshrl.u32 %v90, 7
    %v92 = vsub.s32 0, %v91
    %v93 = vrot.slane %v88, %v92
    %v95 = vadd.f32 %v86, %v93
    %v96 = vadd.f32 %v87, %v93
    %v97 = vld [vmem:[#allocation5] sm:$0xff]
    %v98 = vld [vmem:[#allocation5 + $0x8] sm:$0xff]
    %v99 = vld [vmem:[#allocation5 + $0x10] sm:$0xff]
    %v100 = vld [vmem:[#allocation5 + $0x18] sm:$0xff]
    %v101 = vld [vmem:[%s2] sm:$0x1]
    %v103 = vlaneseq
    %v104 = vshrl.u32 %v103, 7
    %v105 = vsub.s32 0, %v104
    %v106 = vrot.slane %v101, %v105
    %v109 = vsel %vm51, %v95, 0
    %v112 = vsel %vm51, %v96, 0
    %114 = vmatprep.subr.mxu0 0.0
    %115 = vmatpush1.msra.mxu0 %v97
    %116 = vmatprep.subr.mxu0 0.0
    %117 = vmatpush1.msra.mxu0 %v98
    %118 = vmatprep.subr.mxu0 0.0
    %119 = vmatpush1.msra.mxu0 %v99
    %120 = vmatprep.subr.mxu0 0.0
    %121 = vmatpush1.msra.mxu0 %v100
    %122 = vmatprep.subr.mxu0 0.0
    %123 = vmatpush1.msra.mxu0 0.0
    %124 = vmatprep.subr.mxu0 0.0
    %125 = vmatpush1.msra.mxu0 0.0
    %126 = vmatprep.subr.mxu0 0.0
    %127 = vmatpush1.msra.mxu0 0.0
    %128 = vmatprep.subr.mxu0 0.0
    %129 = vmatpush1.msra.mxu0 0.0
    %130 = vmatprep.subr.mxu0 0.0
    %131 = vmatpush1.msra.mxu0 0.0
    %132 = vmatprep.subr.mxu0 0.0
    %133 = vmatpush1.msra.mxu0 0.0
    %134 = vmatprep.subr.mxu0 0.0
    %135 = vmatpush1.msra.mxu0 0.0
    %136 = vmatprep.subr.mxu0 0.0
    %137 = vmatpush1.msra.mxu0 0.0
    %138 = vmatprep.subr.mxu0 0.0
    %139 = vmatpush1.msra.mxu0 0.0
    %140 = vmatprep.subr.mxu0 0.0
    %141 = vmatpush1.msra.mxu0 0.0
    %142 = vmatprep.subr.mxu0 0.0
    %143 = vmatpush1.msra.mxu0 0.0
    %144 = vmatprep.subr.mxu0 0.0
    %145 = vmatpush1.msra.mxu0 0.0
    %146 = vmatprep.subr.mxu0 0.0
    %147 = vmatpush1.msra.mxu0 0.0
    %148 = vmatprep.subr.mxu0 0.0
    %149 = vmatpush1.msra.mxu0 0.0
    %150 = vmatprep.subr.mxu0 0.0
    %151 = vmatpush1.msra.mxu0 0.0
    %152 = vmatprep.subr.mxu0 0.0
    %153 = vmatpush1.msra.mxu0 0.0
    %154 = vmatprep.subr.mxu0 0.0
    %155 = vmatpush1.msra.mxu0 0.0
    %156 = vmatprep.subr.mxu0 0.0
    %157 = vmatpush1.msra.mxu0 0.0
    %158 = vmatprep.subr.mxu0 0.0
    %159 = vmatpush1.msra.mxu0 0.0
    %160 = vmatprep.subr.mxu0 0.0
    %161 = vmatpush1.msra.mxu0 0.0
    %162 = vmatprep.subr.mxu0 0.0
    %163 = vmatpush1.msra.mxu0 0.0
    %164 = vmatprep.subr.mxu0 0.0
    %165 = vmatpush1.msra.mxu0 0.0
    %166 = vmatprep.subr.mxu0 0.0
    %167 = vmatpush1.msra.mxu0 0.0
    %168 = vmatprep.subr.mxu0 0.0
    %169 = vmatpush1.msra.mxu0 0.0
    %170 = vmatprep.subr.mxu0 0.0
    %171 = vmatpush1.msra.mxu0 0.0
    %172 = vmatprep.subr.mxu0 0.0
    %173 = vmatpush1.msra.mxu0 0.0
    %174 = vmatprep.subr.mxu0 0.0
    %175 = vmatpush1.msra.mxu0 0.0
    %176 = vmatprep.subr.mxu0 0.0
    %177 = vmatpush1.msra.mxu0 0.0
    %178 = vmatprep.mubr.f32.mxu0 0.0
    %179 = vmatmul.mubr.f32.gmra.mrb[0].mxu0 %v109
    %v180 = vpop.f32.mrb[0].mxu0
    %v181 = vadd.f32 %v106, %v180
    %v182 = vpop.f32.mrb[0].mxu0
    %183 = vmatprep.mubr.f32.mxu0 0.0
    %184 = vmatmul.mubr.f32.gmra.mrb[0].mxu0 %v112
    %v185 = vpop.f32.mrb[0].mxu0
    %v186 = vadd.f32 %v106, %v185
    %v187 = vpop.f32.mrb[0].mxu0
    %188 = vdwg.mxu0
    %v189 = vmax.f32 %v181, 0.0
    %v190 = vmax.f32 %v186, 0.0
    %vm191 = vcmask 523264
    %192 = vst.msk [vmem:[#allocation7] sm:$0xff] %vm191, %v189
    %193 = vst.msk [vmem:[#allocation7 + $0x8] sm:$0xff] %vm191, %v190
    // Predicated region
    $region30: #{linear_layer.1} parent=1 // pred_check
      _
    $region31: #{linear_layer.1} parent=1 // pred_check_branch
      %195 = sbr.rel (0) target = $region33
    $region32: #{linear_layer.1} parent=1 // pred_region
      %s197 = ssub.s32 256, 256
      %198 = vsyncadd [#allocation4], %s197
      %s199 = sshll.u32 [#allocation7], 4
      %s200 = int_to_ptr.vmem [resolvable:$true] %s199
      %205 = dma.vmem_to_hbm [thread:$0]  %s200, 256, %s5, [#allocation4], 128, 128, 8
    $region33: #{linear_layer.1} parent=1 // pred_fallthru
      _
    // Predicated region
    $region34: #{linear_layer.1} parent=1 // pred_check
      _
    $region35: #{linear_layer.1} parent=1 // pred_check_branch
      %207 = sbr.rel (0) target = $region37
    $region36: #{linear_layer.1} parent=1 // pred_region
      %208 = dma.done [#allocation4], 256
    $region37: #{linear_layer.1} parent=1 // pred_fallthru
      _
    %209 = vsyncpa [#allocation3], 1
    %210 = vsyncpa [#allocation6], 1
    %211 = vsyncpa [#allocation4], 1

</llo_original>
